<compile_context>
chip_gen: v7x
topology: tpu7x:2x2x1
jax: 0.10.0
libtpu: 0.0.40
codegen_flags: <defaults>
</compile_context>

<pallas_src>
import jax
import jax.numpy as jnp
from jax.experimental import pallas as pl
from jax.experimental.pallas import tpu as pltpu


def _tree_sum(parts):
    """Pairwise (tree) sum of a list of same-shaped arrays (short dep chain)."""
    parts = list(parts)
    while len(parts) > 1:
        nxt = [parts[i] + parts[i + 1] for i in range(0, len(parts) - 1, 2)]
        if len(parts) % 2:
            nxt.append(parts[-1])
        parts = nxt
    return parts[0]


def _masked_l1_kernel(x_ref, t_ref, m_ref, o_ref):
    # Grid: (p, i, j) = (megacore C-split [parallel], N-blocks [parallel],
    #                    C-block reduction [arbitrary, last]).
    # Each (p, i) owns its own (8, 128) output slab, resident across j.
    @pl.when(pl.program_id(2) == 0)
    def _():
        o_ref[...] = jnp.zeros_like(o_ref)

    x = x_ref[...]                            # (bn, bc*hw), native dtype
    t = t_ref[...]                            # (bn, bc*hw), native dtype
    m = m_ref[...].astype(jnp.float32)        # (bn, hw)

    hw = m.shape[-1]                          # multiple of 128 by construction
    bc = x.shape[-1] // hw                    # channels in this block

    # Dense VPU work in the input dtype (bf16 inputs halve VPU / temp bytes).
    d = jnp.abs(x - t)                        # (bn, bc*hw)

    # Channels are adjacent hw-wide lane groups: tree-sum in f32, then apply
    # the mask once.  |m| keeps exact |x*m - t*m| semantics for any mask sign.
    s = _tree_sum([d[:, c * hw:(c + 1) * hw].astype(jnp.float32)
                   for c in range(bc)])
    s = s * jnp.abs(m)                        # (bn, hw), f32

    rows, lanes = s.shape                     # lanes % 128 == 0 always

    def lane_fold(block):                     # (r, lanes) -> (r, 128), VPU only
        return _tree_sum([block[:, l * 128:(l + 1) * 128]
                          for l in range(lanes // 128)])

    nfull, rem = rows // 8, rows % 8
    if nfull > 0:
        # Vreg-aligned sublane groups folded with VPU adds only.
        r8 = _tree_sum([s[r * 8:(r + 1) * 8, :] for r in range(nfull)])
        o_ref[...] += lane_fold(r8)
    if rem > 0:
        # Small-batch tail (rows < 8 occupancy): still pure VPU; add into the
        # first `rem` sublanes of the accumulator slab.
        tail = lane_fold(s[nfull * 8:rows, :])          # (rem, 128)
        o_ref[0:rem, :] += tail


def _choose_tiles(N, C, HW_pad, itemsize, target_bytes):
    """Pick (bn, bc): biggest per-input block <= target_bytes.

    bn must be a multiple of 8 (sublane tiling) or equal N; the block's last
    dim (bc*HW_pad) is always a multiple of 128 since HW_pad is.
    """
    bn_opts = [d for d in range(1, N + 1)
               if N % d == 0 and (d % 8 == 0 or d == N)]
    bc_opts = [d for d in range(1, C + 1) if C % d == 0]
    best = None
    for bn in bn_opts:
        for bc in bc_opts:
            nbytes = bn * bc * HW_pad * itemsize
            fits = nbytes <= target_bytes
            key = (fits, nbytes if fits else -nbytes)
            if best is None or key > best[0]:
                best = (key, (bn, bc))
    return best[1]


def _vmem_capacity_bytes():
    try:
        return int(pltpu.get_tpu_info().vmem_capacity_bytes)
    except Exception:
        return 64 << 20        # conservative (v7x-class) fallback


def masked_l1_loss(inp, target, mask, *, target_block_bytes=None):
    """inp, target: (N, C, H, W); mask: (N, 1, H, W). Returns scalar mean L1."""
    N, C, H, W = inp.shape
    HW = H * W
    itemsize = jnp.dtype(inp.dtype).itemsize

    vmem_cap = _vmem_capacity_bytes()
    if target_block_bytes is None:
        if vmem_cap <= (64 << 20):       # v7x-class: 64 MiB VMEM per TC
            target_block_bytes = (6 << 20) if itemsize < 4 else (8 << 20)
        else:                            # v5e / v6e: 128 MiB VMEM
            target_block_bytes = 12 << 20

    # Pad the spatial axis up to a multiple of 128 so every channel lane group
    # stays vreg-aligned.  Padded mask elements are 0 -> contribute nothing.
    HW_pad = ((HW + 127) // 128) * 128
    x3 = inp.reshape(N, C, HW)
    t3 = target.reshape(N, C, HW)
    m2 = mask.reshape(N, HW)
    if HW_pad != HW:
        pad = HW_pad - HW
        x3 = jnp.pad(x3, ((0, 0), (0, 0), (0, pad)))
        t3 = jnp.pad(t3, ((0, 0), (0, 0), (0, pad)))
        m2 = jnp.pad(m2, ((0, 0), (0, pad)))
    x2 = x3.reshape(N, C * HW_pad)       # free reshape when no padding (NCHW)
    t2 = t3.reshape(N, C * HW_pad)

    bn, bc = _choose_tiles(N, C, HW_pad, itemsize, target_block_bytes)
    g_n = N // bn
    g_c = C // bc
    # Megacore guarantee (v7x, 2 TCs): if there is only one N-block, split the
    # C reduction across a size-2 leading parallel axis; each half owns its
    # own output slab.  Harmless (g_p == 1) on single-TC chips / large N.
    g_p = 2 if (g_n == 1 and g_c >= 2 and g_c % 2 == 0) else 1
    g_cp = g_c // g_p
    out_rows = g_p * g_n * 8

    # VMEM budget derived from the chosen tiles:
    #   2 inputs x 2 pipeline buffers x block + 2 x mask block
    #   + f32 temporaries (d / channel-sum slices) + fold scratch + slack.
    blk = bn * bc * HW_pad * itemsize
    mblk = bn * HW_pad * itemsize
    f32_blk = bn * bc * HW_pad * 4
    est = 2 * 2 * blk + 2 * mblk + 2 * f32_blk + 8 * bn * HW_pad * 4 + (2 << 20)
    vmem_limit = int(min(max(est, 16 << 20), vmem_cap - (2 << 20)))

    cost = pl.CostEstimate(
        flops=3 * N * C * HW_pad + 2 * N * HW_pad,
        transcendentals=0,
        bytes_accessed=(2 * N * C * HW_pad + N * HW_pad) * itemsize
                       + out_rows * 128 * 4,
    )

    partials = pl.pallas_call(
        _masked_l1_kernel,
        out_shape=jax.ShapeDtypeStruct((out_rows, 128), jnp.float32),
        grid=(g_p, g_n, g_cp),
        in_specs=[
            pl.BlockSpec((bn, bc * HW_pad), lambda p, i, j: (i, p * g_cp + j)),
            pl.BlockSpec((bn, bc * HW_pad), lambda p, i, j: (i, p * g_cp + j)),
            pl.BlockSpec((bn, HW_pad), lambda p, i, j: (i, 0)),
        ],
        # Each (p, i) owns its own (8,128) partial-sum slab, resident across
        # the reduction (j) axis -> race-free under the parallel axes.
        out_specs=pl.BlockSpec((8, 128), lambda p, i, j: (p * g_n + i, 0)),
        compiler_params=pltpu.CompilerParams(
            dimension_semantics=("parallel", "parallel", "arbitrary"),
            vmem_limit_bytes=vmem_limit,
        ),
        cost_estimate=cost,
    )(x2, t2, m2)

    total = jnp.sum(partials)
    # nn.L1Loss default reduction='mean' over all N*C*H*W elements.
    return (total / (N * C * H * W)).astype(inp.dtype)


if __name__ == "__main__":
    key = jax.random.PRNGKey(0)
    k1, k2, k3 = jax.random.split(key, 3)

    # Shapes implied by the module: NCHW inputs, (N,1,H,W) mask.
    N, C, H, W = 2, 4, 16, 16
    x = jax.random.normal(k1, (N, C, H, W), dtype=jnp.float32)
    t = jax.random.normal(k2, (N, C, H, W), dtype=jnp.float32)
    mask = (jax.random.uniform(k3, (N, 1, H, W)) > 0.5).astype(jnp.float32)

    loss = jax.block_until_ready(masked_l1_loss(x, t, mask))
    m_exp = jnp.broadcast_to(mask, (N, C, H, W))
    ref = jnp.mean(jnp.abs(x * m_exp - t * m_exp))
    assert jnp.allclose(loss, ref, rtol=1e-5, atol=1e-6), (loss, ref)

    # Multi-step reduction + megacore C-split path (small blocks forced).
    N2, C2 = 8, 4
    x2 = jax.random.normal(k1, (N2, C2, H, W), dtype=jnp.float32)
    t2 = jax.random.normal(k2, (N2, C2, H, W), dtype=jnp.float32)
    m2 = (jax.random.uniform(k3, (N2, 1, H, W)) > 0.5).astype(jnp.float32)
    loss2 = jax.block_until_ready(
        masked_l1_loss(x2, t2, m2, target_block_bytes=8 * 1024))
    m2_exp = jnp.broadcast_to(m2, (N2, C2, H, W))
    ref2 = jnp.mean(jnp.abs(x2 * m2_exp - t2 * m2_exp))
    assert jnp.allclose(loss2, ref2, rtol=1e-5, atol=1e-6), (loss2, ref2)

    # bf16 path (diff in bf16, f32 accumulation; result cast back to bf16).
    xb = x.astype(jnp.bfloat16)
    tb = t.astype(jnp.bfloat16)
    mb = mask.astype(jnp.bfloat16)
    loss3 = jax.block_until_ready(masked_l1_loss(xb, tb, mb))
    ref3 = jnp.mean(jnp.abs(xb.astype(jnp.float32) * m_exp
                            - tb.astype(jnp.float32) * m_exp))
    assert jnp.allclose(loss3.astype(jnp.float32), ref3, rtol=2e-2, atol=1e-2), (
        loss3, ref3)

    print("KERNEL_OK")
</pallas_src>

<mosaic_0001>
module attributes {stable_mosaic.version = 11 : i64} {
  func.func @_masked_l1_kernel(%arg0: i32, %arg1: i32, %arg2: i32, %arg3: memref<2x1024xf32, #tpu.memory_space<vmem>>, %arg4: memref<2x1024xf32, #tpu.memory_space<vmem>>, %arg5: memref<2x256xf32, #tpu.memory_space<vmem>>, %arg6: memref<8x128xf32, #tpu.memory_space<vmem>>) attributes {dimension_semantics = [#tpu.dimension_semantics<parallel>, #tpu.dimension_semantics<parallel>, #tpu.dimension_semantics<arbitrary>], iteration_bounds = array<i64: 1, 1, 1>, scalar_prefetch = 0 : i64, scratch_operands = 0 : i64, tpu.core_type = #tpu.core_type<tc>, window_params = [{transform_indices = @transform_0, window_bounds = array<i64: 2, 1024>}, {transform_indices = @transform_1, window_bounds = array<i64: 2, 1024>}, {transform_indices = @transform_2, window_bounds = array<i64: 2, 256>}, {transform_indices = @transform_3, window_bounds = array<i64: 8, 128>}]} {
    %c0_i32 = arith.constant 0 : i32
    %0 = arith.cmpi eq, %arg2, %c0_i32 : i32
    %1 = arith.extui %0 : i1 to i32
    %c0_i32_0 = arith.constant 0 : i32
    %2 = arith.cmpi ne, %1, %c0_i32_0 : i32
    scf.if %2 {
      %cst = arith.constant 0.000000e+00 : f32
      %23 = vector.broadcast %cst : f32 to vector<8x128xf32>
      %c0_10 = arith.constant 0 : index
      %c0_11 = arith.constant 0 : index
      %24 = vector.load %arg6[%c0_10, %c0_11] : memref<8x128xf32, #tpu.memory_space<vmem>>, vector<8x128xf32>
      tpu.vector_store %arg6[%c0_10, %c0_11], %23 {strides = array<i32>} : memref<8x128xf32, #tpu.memory_space<vmem>>, vector<8x128xf32>,
    } else {
    }
    %c0 = arith.constant 0 : index
    %c0_1 = arith.constant 0 : index
    %3 = vector.load %arg3[%c0, %c0_1] : memref<2x1024xf32, #tpu.memory_space<vmem>>, vector<2x1024xf32>
    %c0_2 = arith.constant 0 : index
    %c0_3 = arith.constant 0 : index
    %4 = vector.load %arg4[%c0_2, %c0_3] : memref<2x1024xf32, #tpu.memory_space<vmem>>, vector<2x1024xf32>
    %c0_4 = arith.constant 0 : index
    %c0_5 = arith.constant 0 : index
    %5 = vector.load %arg5[%c0_4, %c0_5] : memref<2x256xf32, #tpu.memory_space<vmem>>, vector<2x256xf32>
    %6 = arith.subf %3, %4 : vector<2x1024xf32>
    %7 = math.absf %6 : vector<2x1024xf32>
    %8 = vector.extract_strided_slice %7 {offsets = [0, 0], sizes = [2, 256], strides = [1, 1]} : vector<2x1024xf32> to vector<2x256xf32>
    %9 = vector.extract_strided_slice %7 {offsets = [0, 256], sizes = [2, 256], strides = [1, 1]} : vector<2x1024xf32> to vector<2x256xf32>
    %10 = vector.extract_strided_slice %7 {offsets = [0, 512], sizes = [2, 256], strides = [1, 1]} : vector<2x1024xf32> to vector<2x256xf32>
    %11 = vector.extract_strided_slice %7 {offsets = [0, 768], sizes = [2, 256], strides = [1, 1]} : vector<2x1024xf32> to vector<2x256xf32>
    %12 = arith.addf %8, %9 : vector<2x256xf32>
    %13 = arith.addf %10, %11 : vector<2x256xf32>
    %14 = arith.addf %12, %13 : vector<2x256xf32>
    %15 = math.absf %5 : vector<2x256xf32>
    %16 = arith.mulf %14, %15 : vector<2x256xf32>
    %17 = vector.extract_strided_slice %16 {offsets = [0, 0], sizes = [2, 128], strides = [1, 1]} : vector<2x256xf32> to vector<2x128xf32>
    %18 = vector.extract_strided_slice %16 {offsets = [0, 128], sizes = [2, 128], strides = [1, 1]} : vector<2x256xf32> to vector<2x128xf32>
    %19 = arith.addf %17, %18 : vector<2x128xf32>
    %c0_6 = arith.constant 0 : index
    %c0_7 = arith.constant 0 : index
    %20 = vector.load %arg6[%c0_6, %c0_7] : memref<8x128xf32, #tpu.memory_space<vmem>>, vector<2x128xf32>
    %21 = arith.addf %20, %19 : vector<2x128xf32>
    %c0_8 = arith.constant 0 : index
    %c0_9 = arith.constant 0 : index
    %22 = vector.load %arg6[%c0_8, %c0_9] : memref<8x128xf32, #tpu.memory_space<vmem>>, vector<2x128xf32>
    tpu.vector_store %arg6[%c0_8, %c0_9], %21 {strides = array<i32>} : memref<8x128xf32, #tpu.memory_space<vmem>>, vector<2x128xf32>,
    return
  }
  func.func @transform_0(%arg0: i32, %arg1: i32, %arg2: i32) -> (i32, i32) {
    %c1_i32 = arith.constant 1 : i32
    %0 = arith.muli %arg0, %c1_i32 : i32
    %1 = arith.addi %0, %arg2 : i32
    %c0_i32 = arith.constant 0 : i32
    return %arg1, %1 : i32, i32
  }
  func.func @transform_1(%arg0: i32, %arg1: i32, %arg2: i32) -> (i32, i32) {
    %c1_i32 = arith.constant 1 : i32
    %0 = arith.muli %arg0, %c1_i32 : i32
    %1 = arith.addi %0, %arg2 : i32
    %c0_i32 = arith.constant 0 : i32
    return %arg1, %1 : i32, i32
  }
  func.func @transform_2(%arg0: i32, %arg1: i32, %arg2: i32) -> (i32, i32) {
    %c0_i32 = arith.constant 0 : i32
    %c0_i32_0 = arith.constant 0 : i32
    return %arg1, %c0_i32 : i32, i32
  }
  func.func @transform_3(%arg0: i32, %arg1: i32, %arg2: i32) -> (i32, i32) {
    %c1_i32 = arith.constant 1 : i32
    %0 = arith.muli %arg0, %c1_i32 : i32
    %1 = arith.addi %0, %arg1 : i32
    %c0_i32 = arith.constant 0 : i32
    %c0_i32_0 = arith.constant 0 : i32
    return %1, %c0_i32 : i32, i32
  }
}

</mosaic_0001>

<llo_original>
// kernel: tpu_custom_call.1
$region0: #{tpu_custom_call.1}
  #allocation0 [shape = 'u32[]', space=smem, size = 0x4, offset = 0x4, fixed_abs, tag = 'smem constant byte address 0x4 - core index']
  #allocation1 [shape = 'u32[144,128]{1,0:T(1,128)}', space=vmem, size = 0x12000, scoped, tag = 'internal scratch']
  %s0 = inlined_call_operand.hbm [shape: f32[2,1024], index: 0, kind: input, shape index: {}]
  %s1 = inlined_call_operand.hbm [shape: f32[2,1024], index: 1, kind: input, shape index: {}]
  %s2 = inlined_call_operand.vmem [shape: f32[2,256], index: 2, kind: input, shape index: {}]
  %s3 = inlined_call_operand.hbm [shape: f32[8,128], index: 3, kind: output, shape index: {}]
  %s4 = sld [smem:[#allocation0]]
  $region34: #{tpu_custom_call.1} parent=0
    _
  %s6 = ssub.s32 1, %s4
  %s7 = scalar_select 0, %s6, %s4
  $region1: #{tpu_custom_call.1} parent=0
    #allocation2 [shape = 'u8[8192]{0}', space=vmem, size = 0x2000, scoped, tag = 'input window, operand 0, single buffered']
    #allocation3 [shape = 's32[1]{0}', space=sflag, size = 0x4, scoped, tag = 'scoped memory for tpu_custom_call.1']
    #allocation4 [shape = 's32[1]{0}', space=sflag, size = 0x4, scoped, tag = 'scoped memory for tpu_custom_call.1']
    #allocation5 [shape = 'u8[8192]{0}', space=vmem, size = 0x2000, scoped, tag = 'input window, operand 1, single buffered']
    #allocation6 [shape = 's32[1]{0}', space=sflag, size = 0x4, scoped, tag = 'scoped memory for tpu_custom_call.1']
    #allocation7 [shape = 'u8[4096]{0}', space=vmem, size = 0x1000, scoped, tag = 'output window, operand 0, single buffered']
    %8 = vsyncpa [#allocation3], 0
    %9 = vsyncpa [#allocation6], 0
    %10 = vsyncpa [#allocation4], 0
    // Predicated region
    $region2: #{tpu_custom_call.1} parent=1 // pred_check
      _
    $region3: #{tpu_custom_call.1} parent=1 // pred_check_branch
      %12 = sbr.rel (0) target = $region5
    $region4: #{tpu_custom_call.1} parent=1 // pred_region
      %s13 = sadd.s32 0, 0
      %s14 = smul.u32 8, %s13
      %s16 = ssub.s32 256, 256
      %17 = vsyncadd [#allocation3], %s16
      %s18 = smul.addr %s14, 32
      %s19 = scalar_lea.hbm %s0, %s18
      %s21 = sshll.u32 [#allocation2], 4
      %s22 = int_to_ptr.vmem [resolvable:$true] %s21
      %24 = dma.hbm_to_vmem [thread:$0]  %s19, 256, %s22, [#allocation3]
    $region5: #{tpu_custom_call.1} parent=1 // pred_fallthru
      _
    // Predicated region
    $region6: #{tpu_custom_call.1} parent=1 // pred_check
      _
    $region7: #{tpu_custom_call.1} parent=1 // pred_check_branch
      %26 = sbr.rel (0) target = $region9
    $region8: #{tpu_custom_call.1} parent=1 // pred_region
      %s27 = sadd.s32 0, 0
      %s28 = smul.u32 8, %s27
      %s30 = ssub.s32 256, 256
      %31 = vsyncadd [#allocation6], %s30
      %s32 = smul.addr %s28, 32
      %s33 = scalar_lea.hbm %s1, %s32
      %s35 = sshll.u32 [#allocation5], 4
      %s36 = int_to_ptr.vmem [resolvable:$true] %s35
      %38 = dma.hbm_to_vmem [thread:$0]  %s33, 256, %s36, [#allocation6]
    $region9: #{tpu_custom_call.1} parent=1 // pred_fallthru
      _
    // Predicated region
    $region10: #{tpu_custom_call.1} parent=1 // pred_check
      _
    $region11: #{tpu_custom_call.1} parent=1 // pred_check_branch
      %40 = sbr.rel (0) target = $region13
    $region12: #{tpu_custom_call.1} parent=1 // pred_region
      _
    $region13: #{tpu_custom_call.1} parent=1 // pred_fallthru
      _
    // Predicated region
    $region14: #{tpu_custom_call.1} parent=1 // pred_check
      _
    $region15: #{tpu_custom_call.1} parent=1 // pred_check_branch
      %42 = sbr.rel (0) target = $region17
    $region16: #{tpu_custom_call.1} parent=1 // pred_region
      %43 = dma.done [#allocation3], 256
    $region17: #{tpu_custom_call.1} parent=1 // pred_fallthru
      _
    // Predicated region
    $region18: #{tpu_custom_call.1} parent=1 // pred_check
      _
    $region19: #{tpu_custom_call.1} parent=1 // pred_check_branch
      %45 = sbr.rel (0) target = $region21
    $region20: #{tpu_custom_call.1} parent=1 // pred_region
      %46 = dma.done [#allocation6], 256
    $region21: #{tpu_custom_call.1} parent=1 // pred_fallthru
      _
    %s47 = sadd.s32 0, 0
    %s48 = smul.u32 8, %s47
    %s49 = sadd.s32 0, 0
    %s50 = smul.u32 8, %s49
    %s51 = sadd.s32 0, 0
    %p52 = scmp.eq.s32.totalorder 0, 0
    // Predicated region
    $region22: #{tpu_custom_call.1} parent=1 // pred_check
      %p53 = pneg %p52
    $region23: #{tpu_custom_call.1} parent=1 // pred_check_branch
      %55 = sbr.rel (%p53) target = $region25
    $region24: #{tpu_custom_call.1} parent=1 // pred_region
      %56 = vst [vmem:[#allocation7] sm:$0xff] 0.0
    $region25: #{tpu_custom_call.1} parent=1 // pred_fallthru
      _
    %v57 = vld [vmem:[#allocation2] sm:$0xff]
    %v58 = vld [vmem:[#allocation2 + $0x8] sm:$0xff]
    %v59 = vld [vmem:[#allocation5] sm:$0xff]
    %v60 = vld [vmem:[#allocation5 + $0x8] sm:$0xff]
    %v61 = vld [vmem:[%s2] sm:$0xf]
    %v62 = vsub.f32 %v57, %v59
    %v63 = vsub.f32 %v58, %v60
    %v64 = vand.u32 2147483647, %v62
    %v65 = vand.u32 2147483647, %v63
    %v67 = vrot.slane %v64, 4
    %v69 = vadd.f32 %v64, %v67
    %v71 = vrot.slane %v65, 4
    %v73 = vadd.f32 %v65, %v71
    %v74 = vadd.f32 %v69, %v73
    %v75 = vand.u32 2147483647, %v61
    %v76 = vmul.f32 %v74, %v75
    %v78 = vrot.slane %v76, 2
    %v80 = vadd.f32 %v76, %v78
    %v81 = vld [vmem:[#allocation7] sm:$0x3]
    %v82 = vadd.f32 %v81, %v80
    %83 = vst [vmem:[#allocation7] sm:$0x3] %v82
    // Predicated region
    $region26: #{tpu_custom_call.1} parent=1 // pred_check
      _
    $region27: #{tpu_custom_call.1} parent=1 // pred_check_branch
      %85 = sbr.rel (0) target = $region29
    $region28: #{tpu_custom_call.1} parent=1 // pred_region
      %s86 = sadd.s32 0, 0
      %s88 = ssub.s32 128, 128
      %89 = vsyncadd [#allocation4], %s88
      %s90 = smul.addr %s86, 128
      %s91 = scalar_lea.hbm %s3, %s90
      %s93 = sshll.u32 [#allocation7], 4
      %s94 = int_to_ptr.vmem [resolvable:$true] %s93
      %96 = dma.vmem_to_hbm [thread:$0]  %s94, 128, %s91, [#allocation4]
    $region29: #{tpu_custom_call.1} parent=1 // pred_fallthru
      _
    // Predicated region
    $region30: #{tpu_custom_call.1} parent=1 // pred_check
      _
    $region31: #{tpu_custom_call.1} parent=1 // pred_check_branch
      %98 = sbr.rel (0) target = $region33
    $region32: #{tpu_custom_call.1} parent=1 // pred_region
      %99 = dma.done [#allocation4], 128
    $region33: #{tpu_custom_call.1} parent=1 // pred_fallthru
      _
    %100 = vsyncpa [#allocation3], 1
    %101 = vsyncpa [#allocation6], 1
    %102 = vsyncpa [#allocation4], 1

</llo_original>
